<compile_context>
chip_gen: v6e
topology: v6e:2x2x1
jax: 0.10.0
libtpu: 0.0.40
codegen_flags: <defaults>
</compile_context>

<pallas_src>
import numpy as np
import jax
import jax.numpy as jnp
from jax.experimental import pallas as pl
from jax.experimental.pallas import tpu as pltpu

# ----------------------------- config (small) -------------------------------
B = 16          # batch
NF = 4          # field_size
E = 8           # embedding_size (BatchNorm1d channel count)
LH = 16         # ltl_hidden_size
BN_EPS = 1e-5

FE = NF * E         # 32  input lanes per batch row   (lane = f*E + e)
EH = E * LH         # 128 output lanes per batch row  (lane = e*H + h)
PACK = 128 // FE    # 4   batch rows packed per 128-lane vreg row
PKW = PACK * FE     # 128 packed input lane width
POW = PACK * EH     # 512 packed output lane width


# ----------------------------- Pallas kernel --------------------------------
def ltl_kernel(x_ref, w_ref, aff_ref, out_ref):
    """Fused LogTransformLayer on a packed [TBP, 128] row block.

    x_ref   : [TBP, PACK*FE]   PACK batch rows packed per vreg row (lane-dense)
    x lane g*FE + (f*E + e)  maps to original row 4p+g, field f, embedding e.
    w_ref   : [PACK*FE, PACK*EH]  block-diagonal folded weights (BN0 scale folded in)
    aff_ref : [3, PACK*EH]     row0: pre-exp shift, row1: post-exp scale, row2: shift
    out_ref : [TBP, PACK*EH]   packed output; free row-major reshape to [B, E*H]
    """
    # Dense-lane EUP log over the whole packed tile (no padded lanes).
    lx = jnp.log(jnp.maximum(jnp.abs(x_ref[...]), 1e-7))          # [TBP, 128]

    # Tiny [TBP,128]x[128,512] contraction goes to the (otherwise idle) MXU with
    # f32 accumulation, instead of ~2K VALU ops + ~1K lane broadcasts per block.
    acc = jnp.dot(lx, w_ref[...], preferred_element_type=jnp.float32)   # [TBP, 512]

    z = jnp.exp(acc + aff_ref[0:1, :])                             # dense EUP exp
    out_ref[...] = z * aff_ref[1:2, :] + aff_ref[2:3, :]           # lane-dense store


# ----------------------------- param folding --------------------------------
def _bn_affine(bn):
    s = bn["gamma"] / jnp.sqrt(bn["var"] + BN_EPS)
    t = bn["beta"] - s * bn["mean"]
    return s, t


def fold_ltl_params(params):
    """Fold eval-mode BN0/BN1 + ltl bias into packed (bigw [128,512], aff [3,512])."""
    W = params["ltl_w"]                       # [F, H]
    bias = params["ltl_b"]                    # [H]
    s0, t0 = _bn_affine(params["bn"][0])      # [E], [E]
    s1, t1 = _bn_affine(params["bn"][1])

    # bigw[f*E + e', e*H + h] = (e'==e) * s0[e] * W[f, h]
    diag = jnp.eye(E, dtype=jnp.float32) * s0[None, :]                     # [E(e'), E(e)]
    bigw = (diag[None, :, :, None] * W[:, None, None, :]).reshape(FE, EH)  # [32, 128]

    # pre-exp shift c[e*H+h] = t0[e]*sum_f W[f,h] + bias[h]
    c = (t0[:, None] * W.sum(axis=0)[None, :] + bias[None, :]).reshape(1, EH)
    aff = jnp.concatenate(
        [c, jnp.repeat(s1, LH)[None, :], jnp.repeat(t1, LH)[None, :]], axis=0)  # [3, 128]

    # Replicate block-diagonally / lane-tile for the PACK-row input packing:
    #   bigw_p[g*FE + k, g*EH + m] = bigw[k, m]   (zero off the diagonal blocks)
    bigw_p = jnp.kron(jnp.eye(PACK, dtype=jnp.float32), bigw)   # [128, 512]
    aff_p = jnp.tile(aff, (1, PACK))                            # [3,   512]
    return bigw_p, aff_p


# ----------------------------- forward wrapper -------------------------------
def ltl_forward(params, inputs, *, row_block=1024):
    """row_block counts original batch rows; PACK (=4) rows share one packed vreg row."""
    bsz = inputs.shape[0]
    bigw_p, aff_p = fold_ltl_params(params)       # tiny, params-only host prep

    x2d = inputs.reshape(bsz, FE)                 # free row-major flatten of [B,F,E]

    # Packed-row tiling with a cdiv grid (no divisibility requirement on bsz).
    n_packed = pl.cdiv(bsz, PACK)
    tbp = max(1, min(row_block // PACK, n_packed))
    if tbp < n_packed:                            # multi-step grid: keep sublane-aligned tiles
        tbp = max(8, (tbp // 8) * 8)
    grid = pl.cdiv(n_packed, tbp)

    # Pad tail rows with 1.0: log(1)=0 -> finite exp, padded rows are sliced off below.
    rows_pad = grid * tbp * PACK
    if rows_pad != bsz:
        x2d = jnp.concatenate(
            [x2d, jnp.ones((rows_pad - bsz, FE), x2d.dtype)], axis=0)
    xp = x2d.reshape(grid * tbp, PKW)             # pack 4 rows per 128-lane row (free)

    out = pl.pallas_call(
        ltl_kernel,
        out_shape=jax.ShapeDtypeStruct((grid * tbp, POW), jnp.float32),
        grid=(grid,),
        in_specs=[
            pl.BlockSpec((tbp, PKW), lambda i: (i, 0)),   # packed batch-row block
            pl.BlockSpec((PKW, POW), lambda i: (0, 0)),   # folded weights (resident)
            pl.BlockSpec((3, POW), lambda i: (0, 0)),     # packed affine constants
        ],
        out_specs=pl.BlockSpec((tbp, POW), lambda i: (i, 0)),
        compiler_params=pltpu.CompilerParams(
            dimension_semantics=("parallel",)),           # megacore sharding on v7x
    )(xp, bigw_p, aff_p)

    # Free row-major reshape: packed [p, g*EH+m] -> logical [4p+g, m]; drop pad rows.
    return out.reshape(grid * tbp * PACK, EH)[:bsz]


# ----------------------------- parameters ------------------------------------
def init_params(key):
    ks = jax.random.split(key, 4)
    p = {}
    p["ltl_w"] = jax.random.normal(ks[0], (NF, LH), jnp.float32) * 1e-4   # init.normal_(std=1e-4)
    p["ltl_b"] = jax.random.normal(ks[1], (LH,), jnp.float32)             # init.normal_

    # Eval-mode BatchNorm1d(E) x2 with arbitrary running stats / affine params
    # (PyTorch's fresh init mean=0, var=1, gamma=1, beta=0 is a special case).
    def bn(k):
        k1, k2, k3, k4 = jax.random.split(k, 4)
        return dict(gamma=jax.random.uniform(k1, (E,), jnp.float32, 0.5, 1.5),
                    beta=jax.random.normal(k2, (E,), jnp.float32) * 0.1,
                    mean=jax.random.normal(k3, (E,), jnp.float32) * 0.1,
                    var=jax.random.uniform(k4, (E,), jnp.float32, 0.5, 1.5))
    p["bn"] = [bn(ks[2]), bn(ks[3])]
    return p


# ----------------------------- pure-JAX reference -----------------------------
def ltl_reference(params, inputs):
    a = jnp.maximum(jnp.abs(inputs), 1e-7)
    t = jnp.log(jnp.transpose(a, (0, 2, 1)))               # [B, E, F]
    bn0 = params["bn"][0]
    t = ((t - bn0["mean"][None, :, None]) / jnp.sqrt(bn0["var"] + BN_EPS)[None, :, None]
         * bn0["gamma"][None, :, None] + bn0["beta"][None, :, None])
    t = jnp.einsum("bef,fh->beh", t, params["ltl_w"],
                   precision=jax.lax.Precision.HIGHEST) + params["ltl_b"][None, None, :]
    t = jnp.exp(t)
    bn1 = params["bn"][1]
    t = ((t - bn1["mean"][None, :, None]) / jnp.sqrt(bn1["var"] + BN_EPS)[None, :, None]
         * bn1["gamma"][None, :, None] + bn1["beta"][None, :, None])
    return t.reshape(inputs.shape[0], -1)                  # == torch.flatten(start_dim=1)


# ----------------------------- main -------------------------------------------
if __name__ == "__main__":
    key = jax.random.PRNGKey(0)
    kp, kx = jax.random.split(key)
    params = init_params(kp)

    x = jax.random.normal(kx, (B, NF, E), jnp.float32)      # [batch, field, embedding]

    # Demo batch runs as a single grid step (default row_block covers the whole batch).
    fwd = jax.jit(lambda p, xx: ltl_forward(p, xx))
    y = jax.block_until_ready(fwd(params, x))

    y_ref = ltl_reference(params, x)
    # Tolerance slightly relaxed vs. the pure-VPU version: the in-kernel contraction now
    # uses the MXU with default f32 handling, while the reference einsum uses HIGHEST.
    np.testing.assert_allclose(np.asarray(y), np.asarray(y_ref), rtol=1e-4, atol=1e-4)

    assert y.shape == (B, E * LH)
    print("KERNEL_OK")
</pallas_src>

<mosaic_0001>
module attributes {stable_mosaic.version = 11 : i64} {
  func.func @ltl_kernel(%arg0: i32, %arg1: memref<4x128xf32, #tpu.memory_space<vmem>>, %arg2: memref<128x512xf32, #tpu.memory_space<vmem>>, %arg3: memref<3x512xf32, #tpu.memory_space<vmem>>, %arg4: memref<4x512xf32, #tpu.memory_space<vmem>>) attributes {dimension_semantics = [#tpu.dimension_semantics<parallel>], iteration_bounds = array<i64: 1>, scalar_prefetch = 0 : i64, scratch_operands = 0 : i64, tpu.core_type = #tpu.core_type<tc>, window_params = [{transform_indices = @transform_0, window_bounds = array<i64: 4, 128>}, {pipeline_mode = #tpu.pipeline_mode<synchronous>, transform_indices = @transform_1, window_bounds = array<i64: 128, 512>}, {pipeline_mode = #tpu.pipeline_mode<synchronous>, transform_indices = @transform_2, window_bounds = array<i64: 3, 512>}, {transform_indices = @transform_3, window_bounds = array<i64: 4, 512>}]} {
    %c0 = arith.constant 0 : index
    %c0_0 = arith.constant 0 : index
    %0 = vector.load %arg1[%c0, %c0_0] : memref<4x128xf32, #tpu.memory_space<vmem>>, vector<4x128xf32>
    %1 = math.absf %0 : vector<4x128xf32>
    %cst = arith.constant 1.000000e-07 : f32
    %2 = vector.broadcast %cst : f32 to vector<4x128xf32>
    %3 = arith.maximumf %1, %2 : vector<4x128xf32>
    %4 = math.log %3 : vector<4x128xf32>
    %c0_1 = arith.constant 0 : index
    %c0_2 = arith.constant 0 : index
    %5 = vector.load %arg2[%c0_1, %c0_2] : memref<128x512xf32, #tpu.memory_space<vmem>>, vector<128x512xf32>
    %cst_3 = arith.constant dense<0.000000e+00> : vector<4x512xf32>
    %6 = tpu.matmul %4, %5, %cst_3 {dimension_numbers = #tpu.dot_dimension_numbers<[1], [0], [0], [1], [0, 0, 1, 1], [], []>} : vector<4x128xf32>, vector<128x512xf32>, vector<4x512xf32> -> vector<4x512xf32>
    %c0_4 = arith.constant 0 : index
    %c0_5 = arith.constant 0 : index
    %7 = vector.load %arg3[%c0_4, %c0_5] : memref<3x512xf32, #tpu.memory_space<vmem>>, vector<1x512xf32>
    %8 = vector.broadcast %7 : vector<1x512xf32> to vector<4x512xf32>
    %9 = arith.addf %6, %8 : vector<4x512xf32>
    %10 = math.exp %9 : vector<4x512xf32>
    %c1 = arith.constant 1 : index
    %c0_6 = arith.constant 0 : index
    %11 = vector.load %arg3[%c1, %c0_6] : memref<3x512xf32, #tpu.memory_space<vmem>>, vector<1x512xf32>
    %12 = vector.broadcast %11 : vector<1x512xf32> to vector<4x512xf32>
    %13 = arith.mulf %10, %12 : vector<4x512xf32>
    %c2 = arith.constant 2 : index
    %c0_7 = arith.constant 0 : index
    %14 = vector.load %arg3[%c2, %c0_7] : memref<3x512xf32, #tpu.memory_space<vmem>>, vector<1x512xf32>
    %15 = vector.broadcast %14 : vector<1x512xf32> to vector<4x512xf32>
    %16 = arith.addf %13, %15 : vector<4x512xf32>
    %c0_8 = arith.constant 0 : index
    %c0_9 = arith.constant 0 : index
    %17 = vector.load %arg4[%c0_8, %c0_9] : memref<4x512xf32, #tpu.memory_space<vmem>>, vector<4x512xf32>
    tpu.vector_store %arg4[%c0_8, %c0_9], %16 {strides = array<i32>} : memref<4x512xf32, #tpu.memory_space<vmem>>, vector<4x512xf32>,
    return
  }
  func.func @transform_0(%arg0: i32) -> (i32, i32) {
    %c0_i32 = arith.constant 0 : i32
    %c0_i32_0 = arith.constant 0 : i32
    return %arg0, %c0_i32 : i32, i32
  }
  func.func @transform_1(%arg0: i32) -> (i32, i32) {
    %c0_i32 = arith.constant 0 : i32
    %c0_i32_0 = arith.constant 0 : i32
    %c0_i32_1 = arith.constant 0 : i32
    return %c0_i32, %c0_i32_0 : i32, i32
  }
  func.func @transform_2(%arg0: i32) -> (i32, i32) {
    %c0_i32 = arith.constant 0 : i32
    %c0_i32_0 = arith.constant 0 : i32
    %c0_i32_1 = arith.constant 0 : i32
    return %c0_i32, %c0_i32_0 : i32, i32
  }
  func.func @transform_3(%arg0: i32) -> (i32, i32) {
    %c0_i32 = arith.constant 0 : i32
    %c0_i32_0 = arith.constant 0 : i32
    return %arg0, %c0_i32 : i32, i32
  }
}

</mosaic_0001>

<llo_original>
// kernel: _lambda_.1
$region0: #{_lambda_.1}
  #allocation0 [shape = 'u32[]', space=smem, size = 0x4, offset = 0x4, fixed_abs, tag = 'smem constant byte address 0x4 - core index']
  #allocation1 [shape = 'u32[144,128]{1,0:T(1,128)}', space=vmem, size = 0x12000, scoped, tag = 'internal scratch']
  %s0 = inlined_call_operand.vmem [shape: f32[4,128], index: 0, kind: input, shape index: {}]
  %s1 = inlined_call_operand.vmem [shape: f32[128,512], index: 1, kind: input, shape index: {}]
  %s2 = inlined_call_operand.vmem [shape: f32[3,512], index: 2, kind: input, shape index: {}]
  %s3 = inlined_call_operand.vmem [shape: f32[4,512], index: 3, kind: output, shape index: {}]
  %s4 = sld [smem:[#allocation0]]
  $region22: #{_lambda_.1} parent=0
    _
  %s6 = ssub.s32 1, %s4
  %s7 = scalar_select 0, %s6, %s4
  // Predicated region
  $region2: #{_lambda_.1} parent=0 // pred_check
    _
  $region3: #{_lambda_.1} parent=0 // pred_check_branch
    %9 = sbr.rel (0) target = $region5
  $region4: #{_lambda_.1} parent=0 // pred_region
    _
  $region5: #{_lambda_.1} parent=0 // pred_fallthru
    _
  // Predicated region
  $region6: #{_lambda_.1} parent=0 // pred_check
    _
  $region7: #{_lambda_.1} parent=0 // pred_check_branch
    %11 = sbr.rel (0) target = $region9
  $region8: #{_lambda_.1} parent=0 // pred_region
    _
  $region9: #{_lambda_.1} parent=0 // pred_fallthru
    _
  // Predicated region
  $region10: #{_lambda_.1} parent=0 // pred_check
    _
  $region11: #{_lambda_.1} parent=0 // pred_check_branch
    %13 = sbr.rel (0) target = $region13
  $region12: #{_lambda_.1} parent=0 // pred_region
    _
  $region13: #{_lambda_.1} parent=0 // pred_fallthru
    _
  %v14 = vld [vmem:[%s0] sm:$0xf]
  %v15 = vand.u32 2147483647, %v14
  %v16 = vmax.f32 %v15, 1e-07
  %v17 = vlog2.pop %v16
  %v18 = vmul.f32 %v17, 0.6931472
  %v19 = vld [vmem:[%s1] sm:$0xff]
  %v20 = vld [vmem:[%s1 + $0x8] sm:$0xff]
  %v21 = vld [vmem:[%s1 + $0x10] sm:$0xff]
  %v22 = vld [vmem:[%s1 + $0x18] sm:$0xff]
  %v23 = vld [vmem:[%s1 + $0x20] sm:$0xff]
  %v24 = vld [vmem:[%s1 + $0x28] sm:$0xff]
  %v25 = vld [vmem:[%s1 + $0x30] sm:$0xff]
  %v26 = vld [vmem:[%s1 + $0x38] sm:$0xff]
  %v27 = vld [vmem:[%s1 + $0x40] sm:$0xff]
  %v28 = vld [vmem:[%s1 + $0x48] sm:$0xff]
  %v29 = vld [vmem:[%s1 + $0x50] sm:$0xff]
  %v30 = vld [vmem:[%s1 + $0x58] sm:$0xff]
  %v31 = vld [vmem:[%s1 + $0x60] sm:$0xff]
  %v32 = vld [vmem:[%s1 + $0x68] sm:$0xff]
  %v33 = vld [vmem:[%s1 + $0x70] sm:$0xff]
  %v34 = vld [vmem:[%s1 + $0x78] sm:$0xff]
  %v35 = vld [vmem:[%s1 + $0x80] sm:$0xff]
  %v36 = vld [vmem:[%s1 + $0x88] sm:$0xff]
  %v37 = vld [vmem:[%s1 + $0x90] sm:$0xff]
  %v38 = vld [vmem:[%s1 + $0x98] sm:$0xff]
  %v39 = vld [vmem:[%s1 + $0xa0] sm:$0xff]
  %v40 = vld [vmem:[%s1 + $0xa8] sm:$0xff]
  %v41 = vld [vmem:[%s1 + $0xb0] sm:$0xff]
  %v42 = vld [vmem:[%s1 + $0xb8] sm:$0xff]
  %v43 = vld [vmem:[%s1 + $0xc0] sm:$0xff]
  %v44 = vld [vmem:[%s1 + $0xc8] sm:$0xff]
  %v45 = vld [vmem:[%s1 + $0xd0] sm:$0xff]
  %v46 = vld [vmem:[%s1 + $0xd8] sm:$0xff]
  %v47 = vld [vmem:[%s1 + $0xe0] sm:$0xff]
  %v48 = vld [vmem:[%s1 + $0xe8] sm:$0xff]
  %v49 = vld [vmem:[%s1 + $0xf0] sm:$0xff]
  %v50 = vld [vmem:[%s1 + $0xf8] sm:$0xff]
  %v51 = vld [vmem:[%s1 + $0x100] sm:$0xff]
  %v52 = vld [vmem:[%s1 + $0x108] sm:$0xff]
  %v53 = vld [vmem:[%s1 + $0x110] sm:$0xff]
  %v54 = vld [vmem:[%s1 + $0x118] sm:$0xff]
  %v55 = vld [vmem:[%s1 + $0x120] sm:$0xff]
  %v56 = vld [vmem:[%s1 + $0x128] sm:$0xff]
  %v57 = vld [vmem:[%s1 + $0x130] sm:$0xff]
  %v58 = vld [vmem:[%s1 + $0x138] sm:$0xff]
  %v59 = vld [vmem:[%s1 + $0x140] sm:$0xff]
  %v60 = vld [vmem:[%s1 + $0x148] sm:$0xff]
  %v61 = vld [vmem:[%s1 + $0x150] sm:$0xff]
  %v62 = vld [vmem:[%s1 + $0x158] sm:$0xff]
  %v63 = vld [vmem:[%s1 + $0x160] sm:$0xff]
  %v64 = vld [vmem:[%s1 + $0x168] sm:$0xff]
  %v65 = vld [vmem:[%s1 + $0x170] sm:$0xff]
  %v66 = vld [vmem:[%s1 + $0x178] sm:$0xff]
  %v67 = vld [vmem:[%s1 + $0x180] sm:$0xff]
  %v68 = vld [vmem:[%s1 + $0x188] sm:$0xff]
  %v69 = vld [vmem:[%s1 + $0x190] sm:$0xff]
  %v70 = vld [vmem:[%s1 + $0x198] sm:$0xff]
  %v71 = vld [vmem:[%s1 + $0x1a0] sm:$0xff]
  %v72 = vld [vmem:[%s1 + $0x1a8] sm:$0xff]
  %v73 = vld [vmem:[%s1 + $0x1b0] sm:$0xff]
  %v74 = vld [vmem:[%s1 + $0x1b8] sm:$0xff]
  %v75 = vld [vmem:[%s1 + $0x1c0] sm:$0xff]
  %v76 = vld [vmem:[%s1 + $0x1c8] sm:$0xff]
  %v77 = vld [vmem:[%s1 + $0x1d0] sm:$0xff]
  %v78 = vld [vmem:[%s1 + $0x1d8] sm:$0xff]
  %v79 = vld [vmem:[%s1 + $0x1e0] sm:$0xff]
  %v80 = vld [vmem:[%s1 + $0x1e8] sm:$0xff]
  %v81 = vld [vmem:[%s1 + $0x1f0] sm:$0xff]
  %v82 = vld [vmem:[%s1 + $0x1f8] sm:$0xff]
  %v83 = vld [vmem:[%s2] ss:$4 sm:$0xf]
  %v85 = vlaneseq
  %v86 = vshrl.u32 %v85, 7
  %v87 = vsub.s32 0, %v86
  %v88 = vrot.slane %v83, %v87
  %v89 = vlaneseq
  %v90 = vshrl.u32 %v89, 7
  %v91 = vsub.s32 1, %v90
  %v92 = vrot.slane %v83, %v91
  %v93 = vlaneseq
  %v94 = vshrl.u32 %v93, 7
  %v95 = vsub.s32 2, %v94
  %v96 = vrot.slane %v83, %v95
  %v97 = vlaneseq
  %v98 = vshrl.u32 %v97, 7
  %v99 = vsub.s32 3, %v98
  %v100 = vrot.slane %v83, %v99
  %105 = vmatprep.subr.mxu0 %v80
  %106 = vmatpush1.msra.mxu0 %v79
  %107 = vmatprep.subr.mxu0 %v76
  %108 = vmatpush1.msra.mxu0 %v75
  %109 = vmatprep.subr.mxu0 %v72
  %110 = vmatpush1.msra.mxu0 %v71
  %111 = vmatprep.subr.mxu0 %v68
  %112 = vmatpush1.msra.mxu0 %v67
  %113 = vmatprep.subr.mxu0 %v64
  %114 = vmatpush1.msra.mxu0 %v63
  %115 = vmatprep.subr.mxu0 %v60
  %116 = vmatpush1.msra.mxu0 %v59
  %117 = vmatprep.subr.mxu0 %v56
  %118 = vmatpush1.msra.mxu0 %v55
  %119 = vmatprep.subr.mxu0 %v52
  %120 = vmatpush1.msra.mxu0 %v51
  %121 = vmatprep.subr.mxu0 %v48
  %122 = vmatpush1.msra.mxu0 %v47
  %123 = vmatprep.subr.mxu0 %v44
  %124 = vmatpush1.msra.mxu0 %v43
  %125 = vmatprep.subr.mxu0 %v40
  %126 = vmatpush1.msra.mxu0 %v39
  %127 = vmatprep.subr.mxu0 %v36
  %128 = vmatpush1.msra.mxu0 %v35
  %129 = vmatprep.subr.mxu0 %v32
  %130 = vmatpush1.msra.mxu0 %v31
  %131 = vmatprep.subr.mxu0 %v28
  %132 = vmatpush1.msra.mxu0 %v27
  %133 = vmatprep.subr.mxu0 %v24
  %134 = vmatpush1.msra.mxu0 %v23
  %135 = vmatprep.subr.mxu0 %v20
  %136 = vmatpush1.msra.mxu0 %v19
  %137 = vmatprep.subr.mxu0 0.0
  %138 = vmatpush2.msra.mxu0 0.0
  %139 = vmatprep.subr.mxu0 0.0
  %140 = vmatpush2.msra.mxu0 0.0
  %141 = vmatprep.subr.mxu0 0.0
  %142 = vmatpush2.msra.mxu0 0.0
  %143 = vmatprep.subr.mxu0 0.0
  %144 = vmatpush2.msra.mxu0 0.0
  %145 = vmatprep.subr.mxu0 0.0
  %146 = vmatpush2.msra.mxu0 0.0
  %147 = vmatprep.subr.mxu0 0.0
  %148 = vmatpush2.msra.mxu0 0.0
  %149 = vmatprep.subr.mxu0 0.0
  %150 = vmatpush2.msra.mxu0 0.0
  %151 = vmatprep.subr.mxu0 0.0
  %152 = vmatpush2.msra.mxu0 0.0
  %153 = vmatprep.subr.mxu0 0.0
  %154 = vmatpush2.msra.mxu0 0.0
  %155 = vmatprep.subr.mxu0 0.0
  %156 = vmatpush2.msra.mxu0 0.0
  %157 = vmatprep.subr.mxu0 0.0
  %158 = vmatpush2.msra.mxu0 0.0
  %159 = vmatprep.subr.mxu0 0.0
  %160 = vmatpush2.msra.mxu0 0.0
  %161 = vmatprep.subr.mxu0 0.0
  %162 = vmatpush2.msra.mxu0 0.0
  %163 = vmatprep.subr.mxu0 0.0
  %164 = vmatpush2.msra.mxu0 0.0
  %165 = vmatprep.subr.mxu0 0.0
  %166 = vmatpush2.msra.mxu0 0.0
  %167 = vmatprep.subr.mxu0 0.0
  %168 = vmatpush2.msra.mxu0 0.0
  %169 = vmatprep.mubr.f32.mxu0 0.0
  %170 = vmatmul.mubr.f32.gmra.mxu0 %v18
  %v171 = vpop.f32.mrf.mxu0
  %v172 = vadd.f32 %v88, %v171
  %v173 = vpop.f32.mrf.mxu0
  %v174 = vadd.f32 %v92, %v173
  %175 = vdwg.mxu0
  %176 = vmatprep.subr.mxu0 %v82
  %177 = vmatpush1.msra.mxu0 %v81
  %178 = vmatprep.subr.mxu0 %v78
  %179 = vmatpush1.msra.mxu0 %v77
  %180 = vmatprep.subr.mxu0 %v74
  %181 = vmatpush1.msra.mxu0 %v73
  %182 = vmatprep.subr.mxu0 %v70
  %183 = vmatpush1.msra.mxu0 %v69
  %184 = vmatprep.subr.mxu0 %v66
  %185 = vmatpush1.msra.mxu0 %v65
  %186 = vmatprep.subr.mxu0 %v62
  %187 = vmatpush1.msra.mxu0 %v61
  %188 = vmatprep.subr.mxu0 %v58
  %189 = vmatpush1.msra.mxu0 %v57
  %190 = vmatprep.subr.mxu0 %v54
  %191 = vmatpush1.msra.mxu0 %v53
  %192 = vmatprep.subr.mxu0 %v50
  %193 = vmatpush1.msra.mxu0 %v49
  %194 = vmatprep.subr.mxu0 %v46
  %195 = vmatpush1.msra.mxu0 %v45
  %196 = vmatprep.subr.mxu0 %v42
  %197 = vmatpush1.msra.mxu0 %v41
  %198 = vmatprep.subr.mxu0 %v38
  %199 = vmatpush1.msra.mxu0 %v37
  %200 = vmatprep.subr.mxu0 %v34
  %201 = vmatpush1.msra.mxu0 %v33
  %202 = vmatprep.subr.mxu0 %v30
  %203 = vmatpush1.msra.mxu0 %v29
  %204 = vmatprep.subr.mxu0 %v26
  %205 = vmatpush1.msra.mxu0 %v25
  %206 = vmatprep.subr.mxu0 %v22
  %207 = vmatpush1.msra.mxu0 %v21
  %208 = vmatprep.subr.mxu0 0.0
  %209 = vmatpush2.msra.mxu0 0.0
  %210 = vmatprep.subr.mxu0 0.0
  %211 = vmatpush2.msra.mxu0 0.0
  %212 = vmatprep.subr.mxu0 0.0
  %213 = vmatpush2.msra.mxu0 0.0
  %214 = vmatprep.subr.mxu0 0.0
  %215 = vmatpush2.msra.mxu0 0.0
  %216 = vmatprep.subr.mxu0 0.0
  %217 = vmatpush2.msra.mxu0 0.0
  %218 = vmatprep.subr.mxu0 0.0
  %219 = vmatpush2.msra.mxu0 0.0
  %220 = vmatprep.subr.mxu0 0.0
  %221 = vmatpush2.msra.mxu0 0.0
  %222 = vmatprep.subr.mxu0 0.0
  %223 = vmatpush2.msra.mxu0 0.0
  %224 = vmatprep.subr.mxu0 0.0
  %225 = vmatpush2.msra.mxu0 0.0
  %226 = vmatprep.subr.mxu0 0.0
  %227 = vmatpush2.msra.mxu0 0.0
  %228 = vmatprep.subr.mxu0 0.0
  %229 = vmatpush2.msra.mxu0 0.0
  %230 = vmatprep.subr.mxu0 0.0
  %231 = vmatpush2.msra.mxu0 0.0
  %232 = vmatprep.subr.mxu0 0.0
  %233 = vmatpush2.msra.mxu0 0.0
  %234 = vmatprep.subr.mxu0 0.0
  %235 = vmatpush2.msra.mxu0 0.0
  %236 = vmatprep.subr.mxu0 0.0
  %237 = vmatpush2.msra.mxu0 0.0
  %238 = vmatprep.subr.mxu0 0.0
  %239 = vmatpush2.msra.mxu0 0.0
  %240 = vmatprep.mubr.f32.mxu0 0.0
  %241 = vmatmul.mubr.f32.gmra.mxu0 %v18
  %v242 = vpop.f32.mrf.mxu0
  %v243 = vadd.f32 %v96, %v242
  %v244 = vpop.f32.mrf.mxu0
  %v245 = vadd.f32 %v100, %v244
  %246 = vdwg.mxu0
  %v247 = vmul.f32 %v172, 1.442695
  %v248 = vpow.pop %v247
  %v249 = vmul.f32 %v174, 1.442695
  %v250 = vpow.pop %v249
  %v251 = vmul.f32 %v243, 1.442695
  %v252 = vpow.pop %v251
  %v253 = vmul.f32 %v245, 1.442695
  %v254 = vpow.pop %v253
  %s255 = scalar_lea.vmem %s2, 1
  %v256 = vld [vmem:[%s255] ss:$4 sm:$0xf]
  %v258 = vlaneseq
  %v259 = vshrl.u32 %v258, 7
  %v260 = vsub.s32 0, %v259
  %v261 = vrot.slane %v256, %v260
  %v262 = vlaneseq
  %v263 = vshrl.u32 %v262, 7
  %v264 = vsub.s32 1, %v263
  %v265 = vrot.slane %v256, %v264
  %v266 = vlaneseq
  %v267 = vshrl.u32 %v266, 7
  %v268 = vsub.s32 2, %v267
  %v269 = vrot.slane %v256, %v268
  %v270 = vlaneseq
  %v271 = vshrl.u32 %v270, 7
  %v272 = vsub.s32 3, %v271
  %v273 = vrot.slane %v256, %v272
  %v278 = vmul.f32 %v248, %v261
  %v279 = vmul.f32 %v250, %v265
  %v280 = vmul.f32 %v252, %v269
  %v281 = vmul.f32 %v254, %v273
  %s282 = scalar_lea.vmem %s2, 2
  %v283 = vld [vmem:[%s282] ss:$4 sm:$0xf]
  %v285 = vlaneseq
  %v286 = vshrl.u32 %v285, 7
  %v287 = vsub.s32 0, %v286
  %v288 = vrot.slane %v283, %v287
  %v289 = vlaneseq
  %v290 = vshrl.u32 %v289, 7
  %v291 = vsub.s32 1, %v290
  %v292 = vrot.slane %v283, %v291
  %v293 = vlaneseq
  %v294 = vshrl.u32 %v293, 7
  %v295 = vsub.s32 2, %v294
  %v296 = vrot.slane %v283, %v295
  %v297 = vlaneseq
  %v298 = vshrl.u32 %v297, 7
  %v299 = vsub.s32 3, %v298
  %v300 = vrot.slane %v283, %v299
  %v305 = vadd.f32 %v278, %v288
  %v306 = vadd.f32 %v279, %v292
  %v307 = vadd.f32 %v280, %v296
  %v308 = vadd.f32 %v281, %v300
  %v313 = vcombine.low %v305, %v306
  %v314 = vcombine.low %v307, %v308
  %317 = vst [vmem:[%s3] sm:$0xff] %v313
  %318 = vst [vmem:[%s3 + $0x8] sm:$0xff] %v314
  // Predicated region
  $region14: #{_lambda_.1} parent=0 // pred_check
    _
  $region15: #{_lambda_.1} parent=0 // pred_check_branch
    %320 = sbr.rel (0) target = $region17
  $region16: #{_lambda_.1} parent=0 // pred_region
    _
  $region17: #{_lambda_.1} parent=0 // pred_fallthru
    _
  // Predicated region
  $region18: #{_lambda_.1} parent=0 // pred_check
    _
  $region19: #{_lambda_.1} parent=0 // pred_check_branch
    %322 = sbr.rel (0) target = $region21
  $region20: #{_lambda_.1} parent=0 // pred_region
    _
  $region21: #{_lambda_.1} parent=0 // pred_fallthru
    _

</llo_original>
